<compile_context>
chip_gen: v6e
topology: v6e:2x2x1
jax: 0.10.0
libtpu: 0.0.40
codegen_flags: <defaults>
</compile_context>

<pallas_src>
import functools
from math import log, exp

import jax
import jax.numpy as jnp
from jax.experimental import pallas as pl
from jax.experimental.pallas import tpu as pltpu


# ----------------------------- alpha schedules ------------------------------
def exponential_alpha(T_max, reg_init, eps=0.001):
    T = -T_max / log(eps)

    def f_alpha(x):
        return 1 - reg_init * exp(-x / T)
    return f_alpha


def sigmoid_alpha(T_max, reg_init, eps=0.0001):
    gamma = 2 / T_max * log((1 - eps) / eps)

    def f_alpha(x):
        a = exp(-gamma * (x - T_max / 2))
        return 1 - reg_init * (a / (a + 1))
    return f_alpha


def _round_up(x, m):
    return ((x + m - 1) // m) * m


# --------------------------- projection kernel ------------------------------
def _proj_kernel(pts_ref, dirs_ref, out_ref, *, d_dim):
    # out[r, a] = sum_d pts[r, d] * dirs[d, a]   (VPU broadcast mul/add chain;
    # D is 2/3 so this beats a K-padded MXU matmul and avoids padded HBM copies)
    acc = pts_ref[:, 0:1] * dirs_ref[0:1, :]
    for d in range(1, d_dim):
        acc = acc + pts_ref[:, d:d + 1] * dirs_ref[d:d + 1, :]
    out_ref[...] = acc


def _project(pts2d, dirs):
    """pts2d: (R, D) f32, dirs: (D, A) f32 with A a multiple of 128 -> (R, A)."""
    R, D = pts2d.shape
    A = dirs.shape[1]

    # big lane/sublane-dense row tiles (>=512 rows ~ HBM roofline), capped so a
    # double-buffered (TM, A) f32 output tile stays small even on v7x VMEM
    TM = 2048 if R >= 2048 else _round_up(R, 8)
    R_pad = _round_up(R, TM)
    if R_pad != R:
        pts2d = jnp.pad(pts2d, ((0, R_pad - R), (0, 0)))   # zero rows, sliced off below
    grid = (R_pad // TM,)

    cost = pl.CostEstimate(flops=2 * R_pad * D * A,
                           transcendentals=0,
                           bytes_accessed=4 * (R_pad * D + D * A + R_pad * A))

    out = pl.pallas_call(
        functools.partial(_proj_kernel, d_dim=D),
        out_shape=jax.ShapeDtypeStruct((R_pad, A), jnp.float32),
        grid=grid,
        in_specs=[pl.BlockSpec((TM, D), lambda i: (i, 0)),
                  pl.BlockSpec((D, A), lambda i: (0, 0))],   # dirs resident
        out_specs=pl.BlockSpec((TM, A), lambda i: (i, 0)),
        compiler_params=pltpu.CompilerParams(
            dimension_semantics=("parallel",),
            vmem_limit_bytes=32 * 1024 * 1024),
        cost_estimate=cost,
    )(pts2d, dirs)
    return out[:R]


# ----------------------------- fused loss kernel -----------------------------
def _loss_kernel(w_ref, proba_ref, s_ref, t_ref, cps_ref, shape_ref,
                 out_ref, acc_ref, *, inv_snake_norm, inv_bm, d_dim):
    k = pl.program_id(0)

    @pl.when(k == 0)
    def _():
        acc_ref[...] = jnp.zeros_like(acc_ref)

    # lane-reduce first, weight the (B,1) row sums second (fewer VPU muls)
    row = jnp.sum(jnp.abs(s_ref[...] - t_ref[...]), axis=1, keepdims=True)   # (B, 1)
    acc_ref[...] += jnp.sum(proba_ref[...] * row, keepdims=True)             # (1, 1)

    @pl.when(k == pl.num_programs(0) - 1)
    def _():
        snake = acc_ref[...] * inv_snake_norm                   # (1, 1)
        # ShapeReg: mean_{b,m} ||cps - reg_cps||_2, unrolled over the D lane slices
        dd = cps_ref[:, 0:1] - shape_ref[:, 0:1]
        sq = dd * dd
        for d in range(1, d_dim):
            dd = cps_ref[:, d:d + 1] - shape_ref[:, d:d + 1]
            sq = sq + dd * dd
        reg = jnp.sum(jnp.sqrt(sq), keepdims=True) * inv_bm     # (1, 1)
        # w = [f, 1 - f]  (SMEM scalars; f == 1 reproduces the snake-only branch)
        out_ref[...] = w_ref[0] * snake + w_ref[1] * reg


def _fused_loss(weights, proba2d, sorted_s, sorted_t, cps_flat, shape_flat,
                *, n_samples, nb_angles):
    B, NA = sorted_s.shape
    BM, D = cps_flat.shape

    # largest lane-dense tile that divides NA exactly (NA is a multiple of 128)
    TILE_NA = next((t for t in (2048, 1024, 512, 256, 128) if NA % t == 0), NA)
    grid = (NA // TILE_NA,)

    kernel = functools.partial(
        _loss_kernel,
        inv_snake_norm=1.0 / float(B * n_samples * nb_angles),
        inv_bm=1.0 / float(BM),
        d_dim=D)

    cost = pl.CostEstimate(flops=3 * B * NA + 4 * BM * D,
                           transcendentals=BM,
                           bytes_accessed=4 * (2 * B * NA + B + 2 * BM * D + 3))

    out = pl.pallas_call(
        kernel,
        out_shape=jax.ShapeDtypeStruct((1, 1), jnp.float32),
        grid=grid,
        in_specs=[pl.BlockSpec(memory_space=pltpu.MemorySpace.SMEM),   # [f, 1-f]
                  pl.BlockSpec((B, 1), lambda k: (0, 0)),              # proba (resident)
                  pl.BlockSpec((B, TILE_NA), lambda k: (0, k)),        # sorted_s tile
                  pl.BlockSpec((B, TILE_NA), lambda k: (0, k)),        # sorted_t tile
                  pl.BlockSpec((BM, D), lambda k: (0, 0)),             # cps (resident)
                  pl.BlockSpec((BM, D), lambda k: (0, 0))],            # reg shape (resident)
        out_specs=pl.BlockSpec((1, 1), lambda k: (0, 0)),
        scratch_shapes=[pltpu.VMEM((1, 1), jnp.float32)],
        compiler_params=pltpu.CompilerParams(
            dimension_semantics=("arbitrary",),
            vmem_limit_bytes=32 * 1024 * 1024),
        cost_estimate=cost,
    )(weights, proba2d, sorted_s, sorted_t, cps_flat, shape_flat)
    return out[0, 0]


# --------------------------- jitted forward pipeline --------------------------
@functools.partial(jax.jit, static_argnames=("nb_angles",))
def _regularized_snake_forward(sampling, target, proba, cps, weights, dirs,
                               reg_shape, *, nb_angles):
    B, N, D = sampling.shape
    A = dirs.shape[1]

    # one fused projection call for both point clouds (shared resident dirs)
    pts = jnp.concatenate(
        [sampling.reshape(B * N, D), target.reshape(B * N, D)],
        axis=0).astype(jnp.float32)
    proj = _project(pts, dirs)                          # (2*B*N, A)
    proj_s = proj[:B * N].reshape(B, N, A)
    proj_t = proj[B * N:].reshape(B, N, A)

    # TODO(synk): jnp.sort has no Mosaic lowering; the per-angle 1-D
    # Wasserstein sort stays in plain JAX/XLA (fused into the same jit).
    sorted_s = jnp.sort(proj_s, axis=1).reshape(B, N * A)
    sorted_t = jnp.sort(proj_t, axis=1).reshape(B, N * A)

    proba2d = proba.reshape(B, 1).astype(jnp.float32)
    M = reg_shape.shape[1]
    cps_flat = cps.reshape(B * M, D).astype(jnp.float32)
    shape_flat = jnp.broadcast_to(reg_shape, (B, M, D)).reshape(B * M, D)

    return _fused_loss(weights, proba2d, sorted_s, sorted_t,
                       cps_flat, shape_flat,
                       n_samples=N, nb_angles=nb_angles)


# ------------------------------- module wrapper ------------------------------
class RegularizedSnakeLossPallas:
    def __init__(self, reg_cps, f_alpha='sigmoid', reg_part=1.0,
                 epoch_reg_max=200, eps=0.001, nb_angles=100, seed=0):
        reg_cps = jnp.asarray(reg_cps, jnp.float32)
        self.shape = reg_cps[None]                      # (1, M, D)  (ShapeReg.shape)
        self.eps = eps
        self.nb_angles = nb_angles
        self.nb_angles_pad = _round_up(nb_angles, 128)  # lane-dense angle axis

        # deterministic slicing directions for the sliced Wasserstein loss,
        # zero-padded to a multiple of 128 columns (padded columns contribute 0)
        key = jax.random.PRNGKey(seed)
        dirs = jax.random.normal(key, (reg_cps.shape[-1], nb_angles), jnp.float32)
        dirs = dirs / jnp.linalg.norm(dirs, axis=0, keepdims=True)
        self.dirs = jnp.pad(dirs, ((0, 0), (0, self.nb_angles_pad - nb_angles)))

        self.f_alpha = {'sigmoid': sigmoid_alpha(epoch_reg_max, reg_part),
                        'exponential': exponential_alpha(epoch_reg_max, reg_part)}[f_alpha]
        self.f_epoch = 0
        self.f_epoch = self.update_reg_factor(0)

    def update_reg_factor(self, epoch):
        if self.f_epoch == 1:
            return 1
        self.f_epoch = self.f_alpha(epoch)
        if self.f_epoch > 1 - self.eps:
            self.f_epoch = 1
        return self.f_epoch

    def __call__(self, sampling, target, proba, cps):
        # forward(): if f > 1 - eps the reference returns snake only -> weights (1, 0).
        # f is a runtime SMEM scalar, so per-epoch updates never recompile.
        f = float(self.f_epoch)
        f_eff = 1.0 if f > 1 - self.eps else f
        weights = jnp.array([f_eff, 1.0 - f_eff], jnp.float32)

        return _regularized_snake_forward(
            sampling.astype(jnp.float32), target.astype(jnp.float32),
            proba.astype(jnp.float32), cps.astype(jnp.float32),
            weights, self.dirs, self.shape, nb_angles=self.nb_angles)


# ----------------------------------- demo ------------------------------------
if __name__ == "__main__":
    key = jax.random.PRNGKey(0)
    B, N, D, M = 2, 32, 3, 8          # batch, snake samples, coord dim, control points
    k1, k2, k3, k4, k5 = jax.random.split(key, 5)

    reg_cps = jax.random.normal(k1, (M, D), jnp.float32)      # reference shape (ShapeReg)
    loss_mod = RegularizedSnakeLossPallas(reg_cps)

    sampling = jax.random.normal(k2, (B, N, D), jnp.float32)  # snake samples
    target = jax.random.normal(k3, (B, N, D), jnp.float32)    # target contour points
    proba = jax.nn.sigmoid(jax.random.normal(k4, (B,), jnp.float32))
    cps = jax.random.normal(k5, (B, M, D), jnp.float32)       # predicted control points

    out = loss_mod(sampling, target, proba, cps)
    jax.block_until_ready(out)
    print("KERNEL_OK")
</pallas_src>

<mosaic_0001>
module attributes {stable_mosaic.version = 11 : i64} {
  func.func @_proj_kernel(%arg0: i32, %arg1: memref<128x3xf32, #tpu.memory_space<vmem>>, %arg2: memref<3x128xf32, #tpu.memory_space<vmem>>, %arg3: memref<128x128xf32, #tpu.memory_space<vmem>>) attributes {dimension_semantics = [#tpu.dimension_semantics<parallel>], iteration_bounds = array<i64: 1>, scalar_prefetch = 0 : i64, scratch_operands = 0 : i64, tpu.core_type = #tpu.core_type<tc>, window_params = [{transform_indices = @transform_0, window_bounds = array<i64: 128, 3>}, {pipeline_mode = #tpu.pipeline_mode<synchronous>, transform_indices = @transform_1, window_bounds = array<i64: 3, 128>}, {transform_indices = @transform_2, window_bounds = array<i64: 128, 128>}]} {
    %c0 = arith.constant 0 : index
    %c0_0 = arith.constant 0 : index
    %0 = vector.load %arg1[%c0, %c0_0] : memref<128x3xf32, #tpu.memory_space<vmem>>, vector<128x1xf32>
    %c0_1 = arith.constant 0 : index
    %c0_2 = arith.constant 0 : index
    %1 = vector.load %arg2[%c0_1, %c0_2] : memref<3x128xf32, #tpu.memory_space<vmem>>, vector<1x128xf32>
    %2 = vector.broadcast %0 : vector<128x1xf32> to vector<128x128xf32>
    %3 = vector.broadcast %1 : vector<1x128xf32> to vector<128x128xf32>
    %4 = arith.mulf %2, %3 : vector<128x128xf32>
    %c0_3 = arith.constant 0 : index
    %c1 = arith.constant 1 : index
    %5 = vector.load %arg1[%c0_3, %c1] : memref<128x3xf32, #tpu.memory_space<vmem>>, vector<128x1xf32>
    %c1_4 = arith.constant 1 : index
    %c0_5 = arith.constant 0 : index
    %6 = vector.load %arg2[%c1_4, %c0_5] : memref<3x128xf32, #tpu.memory_space<vmem>>, vector<1x128xf32>
    %7 = vector.broadcast %5 : vector<128x1xf32> to vector<128x128xf32>
    %8 = vector.broadcast %6 : vector<1x128xf32> to vector<128x128xf32>
    %9 = arith.mulf %7, %8 : vector<128x128xf32>
    %10 = arith.addf %4, %9 : vector<128x128xf32>
    %c0_6 = arith.constant 0 : index
    %c2 = arith.constant 2 : index
    %11 = vector.load %arg1[%c0_6, %c2] : memref<128x3xf32, #tpu.memory_space<vmem>>, vector<128x1xf32>
    %c2_7 = arith.constant 2 : index
    %c0_8 = arith.constant 0 : index
    %12 = vector.load %arg2[%c2_7, %c0_8] : memref<3x128xf32, #tpu.memory_space<vmem>>, vector<1x128xf32>
    %13 = vector.broadcast %11 : vector<128x1xf32> to vector<128x128xf32>
    %14 = vector.broadcast %12 : vector<1x128xf32> to vector<128x128xf32>
    %15 = arith.mulf %13, %14 : vector<128x128xf32>
    %16 = arith.addf %10, %15 : vector<128x128xf32>
    %c0_9 = arith.constant 0 : index
    %c0_10 = arith.constant 0 : index
    %17 = vector.load %arg3[%c0_9, %c0_10] : memref<128x128xf32, #tpu.memory_space<vmem>>, vector<128x128xf32>
    tpu.vector_store %arg3[%c0_9, %c0_10], %16 {strides = array<i32>} : memref<128x128xf32, #tpu.memory_space<vmem>>, vector<128x128xf32>,
    return
  }
  func.func @transform_0(%arg0: i32) -> (i32, i32) {
    %c0_i32 = arith.constant 0 : i32
    %c0_i32_0 = arith.constant 0 : i32
    return %arg0, %c0_i32 : i32, i32
  }
  func.func @transform_1(%arg0: i32) -> (i32, i32) {
    %c0_i32 = arith.constant 0 : i32
    %c0_i32_0 = arith.constant 0 : i32
    %c0_i32_1 = arith.constant 0 : i32
    return %c0_i32, %c0_i32_0 : i32, i32
  }
  func.func @transform_2(%arg0: i32) -> (i32, i32) {
    %c0_i32 = arith.constant 0 : i32
    %c0_i32_0 = arith.constant 0 : i32
    return %arg0, %c0_i32 : i32, i32
  }
}

module attributes {stable_mosaic.version = 11 : i64} {
  func.func @_loss_kernel(%arg0: i32, %arg1: memref<2xf32, #tpu.memory_space<smem>>, %arg2: memref<2x1xf32, #tpu.memory_space<vmem>>, %arg3: memref<2x2048xf32, #tpu.memory_space<vmem>>, %arg4: memref<2x2048xf32, #tpu.memory_space<vmem>>, %arg5: memref<16x3xf32, #tpu.memory_space<vmem>>, %arg6: memref<16x3xf32, #tpu.memory_space<vmem>>, %arg7: memref<1x1xf32, #tpu.memory_space<vmem>>, %arg8: memref<1x1xf32, #tpu.memory_space<vmem>>) attributes {dimension_semantics = [#tpu.dimension_semantics<arbitrary>], iteration_bounds = array<i64: 2>, scalar_prefetch = 0 : i64, scratch_operands = 1 : i64, tpu.core_type = #tpu.core_type<tc>, window_params = [{transform_indices = @transform_0, window_bounds = array<i64: 2>}, {pipeline_mode = #tpu.pipeline_mode<synchronous>, transform_indices = @transform_1, window_bounds = array<i64: 2, 1>}, {transform_indices = @transform_2, window_bounds = array<i64: 2, 2048>}, {transform_indices = @transform_3, window_bounds = array<i64: 2, 2048>}, {pipeline_mode = #tpu.pipeline_mode<synchronous>, transform_indices = @transform_4, window_bounds = array<i64: 16, 3>}, {pipeline_mode = #tpu.pipeline_mode<synchronous>, transform_indices = @transform_5, window_bounds = array<i64: 16, 3>}, {pipeline_mode = #tpu.pipeline_mode<synchronous>, transform_indices = @transform_6, window_bounds = array<i64: 1, 1>}]} {
    %c0_i32 = arith.constant 0 : i32
    %0 = arith.cmpi eq, %arg0, %c0_i32 : i32
    %1 = arith.extui %0 : i1 to i32
    %c0_i32_0 = arith.constant 0 : i32
    %2 = arith.cmpi ne, %1, %c0_i32_0 : i32
    scf.if %2 {
      %cst_12 = arith.constant 0.000000e+00 : f32
      %22 = vector.broadcast %cst_12 : f32 to vector<1x1xf32>
      %c0_13 = arith.constant 0 : index
      %c0_14 = arith.constant 0 : index
      %23 = vector.load %arg8[%c0_13, %c0_14] : memref<1x1xf32, #tpu.memory_space<vmem>>, vector<1x1xf32>
      tpu.vector_store %arg8[%c0_13, %c0_14], %22 {strides = array<i32>} : memref<1x1xf32, #tpu.memory_space<vmem>>, vector<1x1xf32>,
    } else {
    }
    %c0 = arith.constant 0 : index
    %c0_1 = arith.constant 0 : index
    %3 = vector.load %arg3[%c0, %c0_1] : memref<2x2048xf32, #tpu.memory_space<vmem>>, vector<2x2048xf32>
    %c0_2 = arith.constant 0 : index
    %c0_3 = arith.constant 0 : index
    %4 = vector.load %arg4[%c0_2, %c0_3] : memref<2x2048xf32, #tpu.memory_space<vmem>>, vector<2x2048xf32>
    %5 = arith.subf %3, %4 : vector<2x2048xf32>
    %6 = math.absf %5 : vector<2x2048xf32>
    %cst = arith.constant dense<0.000000e+00> : vector<2xf32>
    %7 = vector.multi_reduction <add>, %6, %cst [1] : vector<2x2048xf32> to vector<2xf32>
    %8 = vector.shape_cast %7 : vector<2xf32> to vector<2x1xf32>
    %c0_4 = arith.constant 0 : index
    %c0_5 = arith.constant 0 : index
    %9 = vector.load %arg8[%c0_4, %c0_5] : memref<1x1xf32, #tpu.memory_space<vmem>>, vector<1x1xf32>
    %c0_6 = arith.constant 0 : index
    %c0_7 = arith.constant 0 : index
    %10 = vector.load %arg2[%c0_6, %c0_7] : memref<2x1xf32, #tpu.memory_space<vmem>>, vector<2x1xf32>
    %11 = arith.mulf %10, %8 : vector<2x1xf32>
    %12 = vector.shape_cast %11 : vector<2x1xf32> to vector<1x2x1xf32>
    %cst_8 = arith.constant dense<0.000000e+00> : vector<1xf32>
    %13 = vector.multi_reduction <add>, %12, %cst_8 [1, 2] : vector<1x2x1xf32> to vector<1xf32>
    %14 = vector.shape_cast %13 : vector<1xf32> to vector<1x1x1xf32>
    %15 = vector.extract %14[0, 0, 0] : f32 from vector<1x1x1xf32>
    %16 = vector.broadcast %15 : f32 to vector<1x1xf32>
    %17 = arith.addf %9, %16 : vector<1x1xf32>
    %c0_9 = arith.constant 0 : index
    %c0_10 = arith.constant 0 : index
    %18 = vector.load %arg8[%c0_9, %c0_10] : memref<1x1xf32, #tpu.memory_space<vmem>>, vector<1x1xf32>
    tpu.vector_store %arg8[%c0_9, %c0_10], %17 {strides = array<i32>} : memref<1x1xf32, #tpu.memory_space<vmem>>, vector<1x1xf32>,
    %c1_i32 = arith.constant 1 : i32
    %19 = arith.cmpi eq, %arg0, %c1_i32 : i32
    %20 = arith.extui %19 : i1 to i32
    %c0_i32_11 = arith.constant 0 : i32
    %21 = arith.cmpi ne, %20, %c0_i32_11 : i32
    scf.if %21 {
      %c0_12 = arith.constant 0 : index
      %c0_13 = arith.constant 0 : index
      %22 = vector.load %arg8[%c0_12, %c0_13] : memref<1x1xf32, #tpu.memory_space<vmem>>, vector<1x1xf32>
      %cst_14 = arith.constant 1.562500e-04 : f32
      %23 = vector.broadcast %cst_14 : f32 to vector<1x1xf32>
      %24 = arith.mulf %22, %23 : vector<1x1xf32>
      %c0_15 = arith.constant 0 : index
      %c0_16 = arith.constant 0 : index
      %25 = vector.load %arg5[%c0_15, %c0_16] : memref<16x3xf32, #tpu.memory_space<vmem>>, vector<16x1xf32>
      %c0_17 = arith.constant 0 : index
      %c0_18 = arith.constant 0 : index
      %26 = vector.load %arg6[%c0_17, %c0_18] : memref<16x3xf32, #tpu.memory_space<vmem>>, vector<16x1xf32>
      %27 = arith.subf %25, %26 : vector<16x1xf32>
      %28 = arith.mulf %27, %27 : vector<16x1xf32>
      %c0_19 = arith.constant 0 : index
      %c1 = arith.constant 1 : index
      %29 = vector.load %arg5[%c0_19, %c1] : memref<16x3xf32, #tpu.memory_space<vmem>>, vector<16x1xf32>
      %c0_20 = arith.constant 0 : index
      %c1_21 = arith.constant 1 : index
      %30 = vector.load %arg6[%c0_20, %c1_21] : memref<16x3xf32, #tpu.memory_space<vmem>>, vector<16x1xf32>
      %31 = arith.subf %29, %30 : vector<16x1xf32>
      %32 = arith.mulf %31, %31 : vector<16x1xf32>
      %33 = arith.addf %28, %32 : vector<16x1xf32>
      %c0_22 = arith.constant 0 : index
      %c2 = arith.constant 2 : index
      %34 = vector.load %arg5[%c0_22, %c2] : memref<16x3xf32, #tpu.memory_space<vmem>>, vector<16x1xf32>
      %c0_23 = arith.constant 0 : index
      %c2_24 = arith.constant 2 : index
      %35 = vector.load %arg6[%c0_23, %c2_24] : memref<16x3xf32, #tpu.memory_space<vmem>>, vector<16x1xf32>
      %36 = arith.subf %34, %35 : vector<16x1xf32>
      %37 = arith.mulf %36, %36 : vector<16x1xf32>
      %38 = arith.addf %33, %37 : vector<16x1xf32>
      %39 = math.sqrt %38 : vector<16x1xf32>
      %40 = vector.shape_cast %39 : vector<16x1xf32> to vector<1x16x1xf32>
      %cst_25 = arith.constant dense<0.000000e+00> : vector<1xf32>
      %41 = vector.multi_reduction <add>, %40, %cst_25 [1, 2] : vector<1x16x1xf32> to vector<1xf32>
      %42 = vector.shape_cast %41 : vector<1xf32> to vector<1x1x1xf32>
      %43 = vector.extract %42[0, 0, 0] : f32 from vector<1x1x1xf32>
      %44 = vector.broadcast %43 : f32 to vector<1x1xf32>
      %cst_26 = arith.constant 6.250000e-02 : f32
      %45 = vector.broadcast %cst_26 : f32 to vector<1x1xf32>
      %46 = arith.mulf %44, %45 : vector<1x1xf32>
      %c0_27 = arith.constant 0 : index
      %47 = memref.load %arg1[%c0_27] : memref<2xf32, #tpu.memory_space<smem>>
      %48 = vector.broadcast %47 : f32 to vector<1x1xf32>
      %49 = arith.mulf %48, %24 : vector<1x1xf32>
      %c1_28 = arith.constant 1 : index
      %50 = memref.load %arg1[%c1_28] : memref<2xf32, #tpu.memory_space<smem>>
      %51 = vector.broadcast %50 : f32 to vector<1x1xf32>
      %52 = arith.mulf %51, %46 : vector<1x1xf32>
      %53 = arith.addf %49, %52 : vector<1x1xf32>
      %c0_29 = arith.constant 0 : index
      %c0_30 = arith.constant 0 : index
      %54 = vector.load %arg7[%c0_29, %c0_30] : memref<1x1xf32, #tpu.memory_space<vmem>>, vector<1x1xf32>
      tpu.vector_store %arg7[%c0_29, %c0_30], %53 {strides = array<i32>} : memref<1x1xf32, #tpu.memory_space<vmem>>, vector<1x1xf32>,
    } else {
    }
    return
  }
  func.func @transform_0(%arg0: i32) -> i32 {
    %c0_i32 = arith.constant 0 : i32
    %c0_i32_0 = arith.constant 0 : i32
    return %c0_i32 : i32
  }
  func.func @transform_1(%arg0: i32) -> (i32, i32) {
    %c0_i32 = arith.constant 0 : i32
    %c0_i32_0 = arith.constant 0 : i32
    %c0_i32_1 = arith.constant 0 : i32
    return %c0_i32, %c0_i32_0 : i32, i32
  }
  func.func @transform_2(%arg0: i32) -> (i32, i32) {
    %c0_i32 = arith.constant 0 : i32
    %c0_i32_0 = arith.constant 0 : i32
    return %c0_i32, %arg0 : i32, i32
  }
  func.func @transform_3(%arg0: i32) -> (i32, i32) {
    %c0_i32 = arith.constant 0 : i32
    %c0_i32_0 = arith.constant 0 : i32
    return %c0_i32, %arg0 : i32, i32
  }
  func.func @transform_4(%arg0: i32) -> (i32, i32) {
    %c0_i32 = arith.constant 0 : i32
    %c0_i32_0 = arith.constant 0 : i32
    %c0_i32_1 = arith.constant 0 : i32
    return %c0_i32, %c0_i32_0 : i32, i32
  }
  func.func @transform_5(%arg0: i32) -> (i32, i32) {
    %c0_i32 = arith.constant 0 : i32
    %c0_i32_0 = arith.constant 0 : i32
    %c0_i32_1 = arith.constant 0 : i32
    return %c0_i32, %c0_i32_0 : i32, i32
  }
  func.func @transform_6(%arg0: i32) -> (i32, i32) {
    %c0_i32 = arith.constant 0 : i32
    %c0_i32_0 = arith.constant 0 : i32
    %c0_i32_1 = arith.constant 0 : i32
    return %c0_i32, %c0_i32_0 : i32, i32
  }
}

</mosaic_0001>

<llo_original>
// kernel: _regularized_snake_forward.2
$region0: #{_regularized_snake_forward.2}
  #allocation0 [shape = 'u32[]', space=smem, size = 0x4, offset = 0x4, fixed_abs, tag = 'smem constant byte address 0x4 - core index']
  #allocation1 [shape = 'u32[144,128]{1,0:T(1,128)}', space=vmem, size = 0x12000, scoped, tag = 'internal scratch']
  %s0 = inlined_call_operand.vmem [shape: f32[128,3], index: 0, kind: input, shape index: {}]
  %s1 = inlined_call_operand.vmem [shape: f32[3,128], index: 1, kind: input, shape index: {}]
  %s2 = inlined_call_operand.vmem [shape: f32[128,128], index: 2, kind: output, shape index: {}]
  %s3 = sld [smem:[#allocation0]]
  $region18: #{_regularized_snake_forward.2} parent=0
    _
  %s5 = ssub.s32 1, %s3
  %s6 = scalar_select 0, %s5, %s3
  // Predicated region
  $region2: #{_regularized_snake_forward.2} parent=0 // pred_check
    _
  $region3: #{_regularized_snake_forward.2} parent=0 // pred_check_branch
    %8 = sbr.rel (0) target = $region5
  $region4: #{_regularized_snake_forward.2} parent=0 // pred_region
    _
  $region5: #{_regularized_snake_forward.2} parent=0 // pred_fallthru
    _
  // Predicated region
  $region6: #{_regularized_snake_forward.2} parent=0 // pred_check
    _
  $region7: #{_regularized_snake_forward.2} parent=0 // pred_check_branch
    %10 = sbr.rel (0) target = $region9
  $region8: #{_regularized_snake_forward.2} parent=0 // pred_region
    _
  $region9: #{_regularized_snake_forward.2} parent=0 // pred_fallthru
    _
  %v11 = vld [vmem:[%s0] sm:$0xff]
  %v12 = vld [vmem:[%s0 + $0x8] sm:$0xff]
  %v13 = vld [vmem:[%s0 + $0x10] sm:$0xff]
  %v14 = vld [vmem:[%s0 + $0x18] sm:$0xff]
  %v15 = vld [vmem:[%s0 + $0x20] sm:$0xff]
  %v16 = vld [vmem:[%s0 + $0x28] sm:$0xff]
  %v17 = vld [vmem:[%s0 + $0x30] sm:$0xff]
  %v18 = vld [vmem:[%s0 + $0x38] sm:$0xff]
  %v19 = vld [vmem:[%s0 + $0x40] sm:$0xff]
  %v20 = vld [vmem:[%s0 + $0x48] sm:$0xff]
  %v21 = vld [vmem:[%s0 + $0x50] sm:$0xff]
  %v22 = vld [vmem:[%s0 + $0x58] sm:$0xff]
  %v23 = vld [vmem:[%s0 + $0x60] sm:$0xff]
  %v24 = vld [vmem:[%s0 + $0x68] sm:$0xff]
  %v25 = vld [vmem:[%s0 + $0x70] sm:$0xff]
  %v26 = vld [vmem:[%s0 + $0x78] sm:$0xff]
  %v27 = vld [vmem:[%s1] sm:$0x1]
  %29 = vset.pattern.permute.xlu0 0
  %30 = vperm.xlu0 %29, %v11
  %v31 = vpop.permute.xlu0 %30
  %34 = vset.pattern.permute.xlu0 0
  %35 = vperm.xlu0 %34, %v12
  %v36 = vpop.permute.xlu0 %35
  %39 = vset.pattern.permute.xlu0 0
  %40 = vperm.xlu0 %39, %v13
  %v41 = vpop.permute.xlu0 %40
  %44 = vset.pattern.permute.xlu0 0
  %45 = vperm.xlu0 %44, %v14
  %v46 = vpop.permute.xlu0 %45
  %49 = vset.pattern.permute.xlu0 0
  %50 = vperm.xlu0 %49, %v15
  %v51 = vpop.permute.xlu0 %50
  %54 = vset.pattern.permute.xlu0 0
  %55 = vperm.xlu0 %54, %v16
  %v56 = vpop.permute.xlu0 %55
  %59 = vset.pattern.permute.xlu0 0
  %60 = vperm.xlu0 %59, %v17
  %v61 = vpop.permute.xlu0 %60
  %64 = vset.pattern.permute.xlu0 0
  %65 = vperm.xlu0 %64, %v18
  %v66 = vpop.permute.xlu0 %65
  %69 = vset.pattern.permute.xlu0 0
  %70 = vperm.xlu0 %69, %v19
  %v71 = vpop.permute.xlu0 %70
  %74 = vset.pattern.permute.xlu0 0
  %75 = vperm.xlu0 %74, %v20
  %v76 = vpop.permute.xlu0 %75
  %79 = vset.pattern.permute.xlu0 0
  %80 = vperm.xlu0 %79, %v21
  %v81 = vpop.permute.xlu0 %80
  %84 = vset.pattern.permute.xlu0 0
  %85 = vperm.xlu0 %84, %v22
  %v86 = vpop.permute.xlu0 %85
  %89 = vset.pattern.permute.xlu0 0
  %90 = vperm.xlu0 %89, %v23
  %v91 = vpop.permute.xlu0 %90
  %94 = vset.pattern.permute.xlu0 0
  %95 = vperm.xlu0 %94, %v24
  %v96 = vpop.permute.xlu0 %95
  %99 = vset.pattern.permute.xlu0 0
  %100 = vperm.xlu0 %99, %v25
  %v101 = vpop.permute.xlu0 %100
  %104 = vset.pattern.permute.xlu0 0
  %105 = vperm.xlu0 %104, %v26
  %v106 = vpop.permute.xlu0 %105
  %v108 = vlaneseq
  %v109 = vshrl.u32 %v108, 7
  %v110 = vsub.s32 0, %v109
  %v111 = vrot.slane %v27, %v110
  %v112 = vmul.f32 %v31, %v111
  %v113 = vmul.f32 %v36, %v111
  %v114 = vmul.f32 %v41, %v111
  %v115 = vmul.f32 %v46, %v111
  %v116 = vmul.f32 %v51, %v111
  %v117 = vmul.f32 %v56, %v111
  %v118 = vmul.f32 %v61, %v111
  %v119 = vmul.f32 %v66, %v111
  %v120 = vmul.f32 %v71, %v111
  %v121 = vmul.f32 %v76, %v111
  %v122 = vmul.f32 %v81, %v111
  %v123 = vmul.f32 %v86, %v111
  %v124 = vmul.f32 %v91, %v111
  %v125 = vmul.f32 %v96, %v111
  %v126 = vmul.f32 %v101, %v111
  %v127 = vmul.f32 %v106, %v111
  %v128 = vld [vmem:[%s1 + $0x1] sm:$0x1]
  %129 = vset.pattern.permute.xlu0 1
  %130 = vperm.xlu0 %129, %v11
  %v131 = vpop.permute.xlu0 %130
  %133 = vset.pattern.permute.xlu0 1
  %134 = vperm.xlu0 %133, %v12
  %v135 = vpop.permute.xlu0 %134
  %137 = vset.pattern.permute.xlu0 1
  %138 = vperm.xlu0 %137, %v13
  %v139 = vpop.permute.xlu0 %138
  %141 = vset.pattern.permute.xlu0 1
  %142 = vperm.xlu0 %141, %v14
  %v143 = vpop.permute.xlu0 %142
  %145 = vset.pattern.permute.xlu0 1
  %146 = vperm.xlu0 %145, %v15
  %v147 = vpop.permute.xlu0 %146
  %149 = vset.pattern.permute.xlu0 1
  %150 = vperm.xlu0 %149, %v16
  %v151 = vpop.permute.xlu0 %150
  %153 = vset.pattern.permute.xlu0 1
  %154 = vperm.xlu0 %153, %v17
  %v155 = vpop.permute.xlu0 %154
  %157 = vset.pattern.permute.xlu0 1
  %158 = vperm.xlu0 %157, %v18
  %v159 = vpop.permute.xlu0 %158
  %161 = vset.pattern.permute.xlu0 1
  %162 = vperm.xlu0 %161, %v19
  %v163 = vpop.permute.xlu0 %162
  %165 = vset.pattern.permute.xlu0 1
  %166 = vperm.xlu0 %165, %v20
  %v167 = vpop.permute.xlu0 %166
  %169 = vset.pattern.permute.xlu0 1
  %170 = vperm.xlu0 %169, %v21
  %v171 = vpop.permute.xlu0 %170
  %173 = vset.pattern.permute.xlu0 1
  %174 = vperm.xlu0 %173, %v22
  %v175 = vpop.permute.xlu0 %174
  %177 = vset.pattern.permute.xlu0 1
  %178 = vperm.xlu0 %177, %v23
  %v179 = vpop.permute.xlu0 %178
  %181 = vset.pattern.permute.xlu0 1
  %182 = vperm.xlu0 %181, %v24
  %v183 = vpop.permute.xlu0 %182
  %185 = vset.pattern.permute.xlu0 1
  %186 = vperm.xlu0 %185, %v25
  %v187 = vpop.permute.xlu0 %186
  %189 = vset.pattern.permute.xlu0 1
  %190 = vperm.xlu0 %189, %v26
  %v191 = vpop.permute.xlu0 %190
  %v193 = vlaneseq
  %v194 = vshrl.u32 %v193, 7
  %v195 = vsub.s32 0, %v194
  %v196 = vrot.slane %v128, %v195
  %v197 = vmul.f32 %v131, %v196
  %v198 = vmul.f32 %v135, %v196
  %v199 = vmul.f32 %v139, %v196
  %v200 = vmul.f32 %v143, %v196
  %v201 = vmul.f32 %v147, %v196
  %v202 = vmul.f32 %v151, %v196
  %v203 = vmul.f32 %v155, %v196
  %v204 = vmul.f32 %v159, %v196
  %v205 = vmul.f32 %v163, %v196
  %v206 = vmul.f32 %v167, %v196
  %v207 = vmul.f32 %v171, %v196
  %v208 = vmul.f32 %v175, %v196
  %v209 = vmul.f32 %v179, %v196
  %v210 = vmul.f32 %v183, %v196
  %v211 = vmul.f32 %v187, %v196
  %v212 = vmul.f32 %v191, %v196
  %v213 = vadd.f32 %v112, %v197
  %v214 = vadd.f32 %v113, %v198
  %v215 = vadd.f32 %v114, %v199
  %v216 = vadd.f32 %v115, %v200
  %v217 = vadd.f32 %v116, %v201
  %v218 = vadd.f32 %v117, %v202
  %v219 = vadd.f32 %v118, %v203
  %v220 = vadd.f32 %v119, %v204
  %v221 = vadd.f32 %v120, %v205
  %v222 = vadd.f32 %v121, %v206
  %v223 = vadd.f32 %v122, %v207
  %v224 = vadd.f32 %v123, %v208
  %v225 = vadd.f32 %v124, %v209
  %v226 = vadd.f32 %v125, %v210
  %v227 = vadd.f32 %v126, %v211
  %v228 = vadd.f32 %v127, %v212
  %v229 = vld [vmem:[%s1 + $0x2] sm:$0x1]
  %230 = vset.pattern.permute.xlu0 2
  %231 = vperm.xlu0 %230, %v11
  %v232 = vpop.permute.xlu0 %231
  %234 = vset.pattern.permute.xlu0 2
  %235 = vperm.xlu0 %234, %v12
  %v236 = vpop.permute.xlu0 %235
  %238 = vset.pattern.permute.xlu0 2
  %239 = vperm.xlu0 %238, %v13
  %v240 = vpop.permute.xlu0 %239
  %242 = vset.pattern.permute.xlu0 2
  %243 = vperm.xlu0 %242, %v14
  %v244 = vpop.permute.xlu0 %243
  %246 = vset.pattern.permute.xlu0 2
  %247 = vperm.xlu0 %246, %v15
  %v248 = vpop.permute.xlu0 %247
  %250 = vset.pattern.permute.xlu0 2
  %251 = vperm.xlu0 %250, %v16
  %v252 = vpop.permute.xlu0 %251
  %254 = vset.pattern.permute.xlu0 2
  %255 = vperm.xlu0 %254, %v17
  %v256 = vpop.permute.xlu0 %255
  %258 = vset.pattern.permute.xlu0 2
  %259 = vperm.xlu0 %258, %v18
  %v260 = vpop.permute.xlu0 %259
  %262 = vset.pattern.permute.xlu0 2
  %263 = vperm.xlu0 %262, %v19
  %v264 = vpop.permute.xlu0 %263
  %266 = vset.pattern.permute.xlu0 2
  %267 = vperm.xlu0 %266, %v20
  %v268 = vpop.permute.xlu0 %267
  %270 = vset.pattern.permute.xlu0 2
  %271 = vperm.xlu0 %270, %v21
  %v272 = vpop.permute.xlu0 %271
  %274 = vset.pattern.permute.xlu0 2
  %275 = vperm.xlu0 %274, %v22
  %v276 = vpop.permute.xlu0 %275
  %278 = vset.pattern.permute.xlu0 2
  %279 = vperm.xlu0 %278, %v23
  %v280 = vpop.permute.xlu0 %279
  %282 = vset.pattern.permute.xlu0 2
  %283 = vperm.xlu0 %282, %v24
  %v284 = vpop.permute.xlu0 %283
  %286 = vset.pattern.permute.xlu0 2
  %287 = vperm.xlu0 %286, %v25
  %v288 = vpop.permute.xlu0 %287
  %290 = vset.pattern.permute.xlu0 2
  %291 = vperm.xlu0 %290, %v26
  %v292 = vpop.permute.xlu0 %291
  %v294 = vlaneseq
  %v295 = vshrl.u32 %v294, 7
  %v296 = vsub.s32 0, %v295
  %v297 = vrot.slane %v229, %v296
  %v298 = vmul.f32 %v232, %v297
  %v299 = vmul.f32 %v236, %v297
  %v300 = vmul.f32 %v240, %v297
  %v301 = vmul.f32 %v244, %v297
  %v302 = vmul.f32 %v248, %v297
  %v303 = vmul.f32 %v252, %v297
  %v304 = vmul.f32 %v256, %v297
  %v305 = vmul.f32 %v260, %v297
  %v306 = vmul.f32 %v264, %v297
  %v307 = vmul.f32 %v268, %v297
  %v308 = vmul.f32 %v272, %v297
  %v309 = vmul.f32 %v276, %v297
  %v310 = vmul.f32 %v280, %v297
  %v311 = vmul.f32 %v284, %v297
  %v312 = vmul.f32 %v288, %v297
  %v313 = vmul.f32 %v292, %v297
  %v314 = vadd.f32 %v213, %v298
  %v315 = vadd.f32 %v214, %v299
  %v316 = vadd.f32 %v215, %v300
  %v317 = vadd.f32 %v216, %v301
  %v318 = vadd.f32 %v217, %v302
  %v319 = vadd.f32 %v218, %v303
  %v320 = vadd.f32 %v219, %v304
  %v321 = vadd.f32 %v220, %v305
  %v322 = vadd.f32 %v221, %v306
  %v323 = vadd.f32 %v222, %v307
  %v324 = vadd.f32 %v223, %v308
  %v325 = vadd.f32 %v224, %v309
  %v326 = vadd.f32 %v225, %v310
  %v327 = vadd.f32 %v226, %v311
  %v328 = vadd.f32 %v227, %v312
  %v329 = vadd.f32 %v228, %v313
  %330 = vst [vmem:[%s2] sm:$0xff] %v314
  %331 = vst [vmem:[%s2 + $0x8] sm:$0xff] %v315
  %332 = vst [vmem:[%s2 + $0x10] sm:$0xff] %v316
  %333 = vst [vmem:[%s2 + $0x18] sm:$0xff] %v317
  %334 = vst [vmem:[%s2 + $0x20] sm:$0xff] %v318
  %335 = vst [vmem:[%s2 + $0x28] sm:$0xff] %v319
  %336 = vst [vmem:[%s2 + $0x30] sm:$0xff] %v320
  %337 = vst [vmem:[%s2 + $0x38] sm:$0xff] %v321
  %338 = vst [vmem:[%s2 + $0x40] sm:$0xff] %v322
  %339 = vst [vmem:[%s2 + $0x48] sm:$0xff] %v323
  %340 = vst [vmem:[%s2 + $0x50] sm:$0xff] %v324
  %341 = vst [vmem:[%s2 + $0x58] sm:$0xff] %v325
  %342 = vst [vmem:[%s2 + $0x60] sm:$0xff] %v326
  %343 = vst [vmem:[%s2 + $0x68] sm:$0xff] %v327
  %344 = vst [vmem:[%s2 + $0x70] sm:$0xff] %v328
  %345 = vst [vmem:[%s2 + $0x78] sm:$0xff] %v329
  // Predicated region
  $region10: #{_regularized_snake_forward.2} parent=0 // pred_check
    _
  $region11: #{_regularized_snake_forward.2} parent=0 // pred_check_branch
    %347 = sbr.rel (0) target = $region13
  $region12: #{_regularized_snake_forward.2} parent=0 // pred_region
    _
  $region13: #{_regularized_snake_forward.2} parent=0 // pred_fallthru
    _
  // Predicated region
  $region14: #{_regularized_snake_forward.2} parent=0 // pred_check
    _
  $region15: #{_regularized_snake_forward.2} parent=0 // pred_check_branch
    %349 = sbr.rel (0) target = $region17
  $region16: #{_regularized_snake_forward.2} parent=0 // pred_region
    _
  $region17: #{_regularized_snake_forward.2} parent=0 // pred_fallthru
    _

// kernel: _regularized_snake_forward.3
$region0: #{_regularized_snake_forward.3}
  #allocation0 [shape = 'u32[]', space=smem, size = 0x4, offset = 0x4, fixed_abs, tag = 'smem constant byte address 0x4 - core index']
  #allocation1 [shape = 'u32[144,128]{1,0:T(1,128)}', space=vmem, size = 0x12000, scoped, tag = 'internal scratch']
  #allocation2 [shape = 'f32[1,1]{1,0:T(1,128)}', space=vmem, size = 0x200, scoped, tag = 'scratch operand']
  %s0 = inlined_call_operand.vmem [shape: f32[2], index: 0, kind: input, shape index: {}]
  %s1 = inlined_call_operand.vmem [shape: f32[2,1], index: 1, kind: input, shape index: {}]
  %s2 = inlined_call_operand.vmem [shape: f32[2,4096], index: 2, kind: input, shape index: {}]
  %s3 = inlined_call_operand.vmem [shape: f32[2,4096], index: 3, kind: input, shape index: {}]
  %s4 = inlined_call_operand.vmem [shape: f32[16,3], index: 4, kind: input, shape index: {}]
  %s5 = inlined_call_operand.vmem [shape: f32[16,3], index: 5, kind: input, shape index: {}]
  %s6 = inlined_call_operand.hbm [shape: f32[1,1], index: 6, kind: output, shape index: {}]
  %s7 = sld [smem:[#allocation0]]
  $region69: #{_regularized_snake_forward.3} parent=0
    _
  %s9 = ssub.s32 1, %s7
  %s10 = scalar_select 0, %s9, %s7
  $region1: #{_regularized_snake_forward.3} parent=0
    #allocation3 [shape = 'u8[512]{0}', space=smem, size = 0x200, scoped, tag = 'input window, operand 0, single buffered']
    #allocation4 [shape = 's32[2]{0}', space=sflag, size = 0x8, scoped, tag = 'scoped memory for _regularized_snake_forward.3']
    #allocation5 [shape = 's32[2]{0}', space=sflag, size = 0x8, scoped, tag = 'scoped memory for _regularized_snake_forward.3']
    #allocation6 [shape = 'u8[512]{0}', space=vmem, size = 0x400, scoped, tag = 'output window, operand 0, single buffered']
    %11 = vsyncpa [#allocation5], 0
    %12 = vsyncpa [#allocation4], 0
    loop: start=0, step=1, limit=4
    $region2: #{_regularized_snake_forward.3} parent=1 // loop_pre_header
      _
    $region3: #{_regularized_snake_forward.3} parent=1 // loop_header
      %s14 = sphi 0, %s18
      %p15 = scmp.ge.s32.totalorder %s14, 4
      %s22 = sphi 0, %s22
      %s24 = sphi 0, %s22
      %s25 = sphi 0, %s24
      %s39 = sphi 0, %s25
      %s43 = sphi 0, %s43
      %s45 = sphi 0, %s43
      %s46 = sphi 0, %s45
      %s60 = sphi 0, %s46
      %s66 = sphi 0, %s68
      %s69 = sphi 0, %s66
      %s70 = sphi 0, %s69
      %s86 = sphi 0, %s70
      %s92 = sphi 0, %s94
      %s95 = sphi 0, %s92
      %s96 = sphi 0, %s95
      %s112 = sphi 0, %s96
      %s116 = sphi 0, %s116
      %s118 = sphi 0, %s116
      %s119 = sphi 0, %s118
      %s133 = sphi 0, %s119
      %s137 = sphi 0, %s137
      %s139 = sphi 0, %s137
      %s140 = sphi 0, %s139
      %s154 = sphi 0, %s140
      %s158 = sphi 0, %s158
      %s160 = sphi 0, %s158
      %s161 = sphi 0, %s160
      %s175 = sphi 0, %s161
    $region4: #{_regularized_snake_forward.3} parent=1 // loop_header_branch
      %17 = sbr.rel (%p15) target = $region8
    $region5: #{_regularized_snake_forward.3} parent=1 // loop_body
      %s19 = ssub.s32 %s14, 1
      %s20 = ssub.s32 %s14, 2
      %s21 = sadd.s32 %s14, 1
      %s23 = sadd.s32 %s22, 1
      %p26 = scmp.eq.s32.totalorder %s14, 1
      %p27 = scmp.ne.s32.totalorder %s22, %s24
      %p28 = scmp.eq.s32.totalorder %s14, 0
      %p29 = por %p27, %p28
      %p30 = scmp.ne.s32.totalorder %s22, %s24
      %p31 = scmp.eq.s32.totalorder %s19, 1
      %p32 = por %p30, %p31
      %p33 = scmp.ne.s32.totalorder %s24, %s25
      %p34 = scmp.eq.s32.totalorder %s19, 0
      %p35 = por %p33, %p34
      %p36 = scmp.ne.s32.totalorder %s24, %s25
      %p37 = scmp.eq.s32.totalorder %s20, 1
      %p38 = por %p36, %p37
      %p40 = scmp.ne.s32.totalorder %s25, %s39
      %p41 = scmp.eq.s32.totalorder %s20, 0
      %p42 = por %p40, %p41
      %s44 = sadd.s32 %s43, 1
      %p47 = scmp.eq.s32.totalorder %s14, 1
      %p48 = scmp.ne.s32.totalorder %s43, %s45
      %p49 = scmp.eq.s32.totalorder %s14, 0
      %p50 = por %p48, %p49
      %p51 = scmp.ne.s32.totalorder %s43, %s45
      %p52 = scmp.eq.s32.totalorder %s19, 1
      %p53 = por %p51, %p52
      %p54 = scmp.ne.s32.totalorder %s45, %s46
      %p55 = scmp.eq.s32.totalorder %s19, 0
      %p56 = por %p54, %p55
      %p57 = scmp.ne.s32.totalorder %s45, %s46
      %p58 = scmp.eq.s32.totalorder %s20, 1
      %p59 = por %p57, %p58
      %p61 = scmp.ne.s32.totalorder %s46, %s60
      %p62 = scmp.eq.s32.totalorder %s20, 0
      %p63 = por %p61, %p62
      %s64 = ssub.s32 %s14, %s21
      %p65 = scmp.eq.s32.totalorder %s64, 0
      %s67 = sadd.s32 %s66, 1
      %s68 = scalar_select %p65, %s66, %s67
      %p71 = pneg %p65
      %p72 = scmp.eq.s32.totalorder %s14, 1
      %p73 = por %p71, %p72
      %p74 = scmp.ne.s32.totalorder %s66, %s69
      %p75 = scmp.eq.s32.totalorder %s14, 0
      %p76 = por %p74, %p75
      %p77 = scmp.ne.s32.totalorder %s66, %s69
      %p78 = scmp.eq.s32.totalorder %s19, 1
      %p79 = por %p77, %p78
      %p80 = scmp.ne.s32.totalorder %s69, %s70
      %p81 = scmp.eq.s32.totalorder %s19, 0
      %p82 = por %p80, %p81
      %p83 = scmp.ne.s32.totalorder %s69, %s70
      %p84 = scmp.eq.s32.totalorder %s20, 1
      %p85 = por %p83, %p84
      %p87 = scmp.ne.s32.totalorder %s70, %s86
      %p88 = scmp.eq.s32.totalorder %s20, 0
      %p89 = por %p87, %p88
      %s90 = ssub.s32 %s14, %s21
      %p91 = scmp.eq.s32.totalorder %s90, 0
      %s93 = sadd.s32 %s92, 1
      %s94 = scalar_select %p91, %s92, %s93
      %p97 = pneg %p91
      %p98 = scmp.eq.s32.totalorder %s14, 1
      %p99 = por %p97, %p98
      %p100 = scmp.ne.s32.totalorder %s92, %s95
      %p101 = scmp.eq.s32.totalorder %s14, 0
      %p102 = por %p100, %p101
      %p103 = scmp.ne.s32.totalorder %s92, %s95
      %p104 = scmp.eq.s32.totalorder %s19, 1
      %p105 = por %p103, %p104
      %p106 = scmp.ne.s32.totalorder %s95, %s96
      %p107 = scmp.eq.s32.totalorder %s19, 0
      %p108 = por %p106, %p107
      %p109 = scmp.ne.s32.totalorder %s95, %s96
      %p110 = scmp.eq.s32.totalorder %s20, 1
      %p111 = por %p109, %p110
      %p113 = scmp.ne.s32.totalorder %s96, %s112
      %p114 = scmp.eq.s32.totalorder %s20, 0
      %p115 = por %p113, %p114
      %s117 = sadd.s32 %s116, 1
      %p120 = scmp.eq.s32.totalorder %s14, 1
      %p121 = scmp.ne.s32.totalorder %s116, %s118
      %p122 = scmp.eq.s32.totalorder %s14, 0
      %p123 = por %p121, %p122
      %p124 = scmp.ne.s32.totalorder %s116, %s118
      %p125 = scmp.eq.s32.totalorder %s19, 1
      %p126 = por %p124, %p125
      %p127 = scmp.ne.s32.totalorder %s118, %s119
      %p128 = scmp.eq.s32.totalorder %s19, 0
      %p129 = por %p127, %p128
      %p130 = scmp.ne.s32.totalorder %s118, %s119
      %p131 = scmp.eq.s32.totalorder %s20, 1
      %p132 = por %p130, %p131
      %p134 = scmp.ne.s32.totalorder %s119, %s133
      %p135 = scmp.eq.s32.totalorder %s20, 0
      %p136 = por %p134, %p135
      %s138 = sadd.s32 %s137, 1
      %p141 = scmp.eq.s32.totalorder %s14, 1
      %p142 = scmp.ne.s32.totalorder %s137, %s139
      %p143 = scmp.eq.s32.totalorder %s14, 0
      %p144 = por %p142, %p143
      %p145 = scmp.ne.s32.totalorder %s137, %s139
      %p146 = scmp.eq.s32.totalorder %s19, 1
      %p147 = por %p145, %p146
      %p148 = scmp.ne.s32.totalorder %s139, %s140
      %p149 = scmp.eq.s32.totalorder %s19, 0
      %p150 = por %p148, %p149
      %p151 = scmp.ne.s32.totalorder %s139, %s140
      %p152 = scmp.eq.s32.totalorder %s20, 1
      %p153 = por %p151, %p152
      %p155 = scmp.ne.s32.totalorder %s140, %s154
      %p156 = scmp.eq.s32.totalorder %s20, 0
      %p157 = por %p155, %p156
      %s159 = sadd.s32 %s158, 1
      %p162 = scmp.eq.s32.totalorder %s14, 1
      %p163 = scmp.ne.s32.totalorder %s158, %s160
      %p164 = scmp.eq.s32.totalorder %s14, 0
      %p165 = por %p163, %p164
      %p166 = scmp.ne.s32.totalorder %s158, %s160
      %p167 = scmp.eq.s32.totalorder %s19, 1
      %p168 = por %p166, %p167
      %p169 = scmp.ne.s32.totalorder %s160, %s161
      %p170 = scmp.eq.s32.totalorder %s19, 0
      %p171 = por %p169, %p170
      %p172 = scmp.ne.s32.totalorder %s160, %s161
      %p173 = scmp.eq.s32.totalorder %s20, 1
      %p174 = por %p172, %p173
      %p176 = scmp.ne.s32.totalorder %s161, %s175
      %p177 = scmp.eq.s32.totalorder %s20, 0
      %p178 = por %p176, %p177
      %p179 = scmp.le.s32.totalorder 1, %s14
      %p180 = scmp.lt.s32.totalorder %s14, 3
      %p181 = pnand %p179, %p180
      %p182 = pneg %p181
      // Predicated region
      $region9: #{_regularized_snake_forward.3} parent=5 // pred_check
        _
      $region10: #{_regularized_snake_forward.3} parent=5 // pred_check_branch
        %184 = sbr.rel (%p181) target = $region12
      $region11: #{_regularized_snake_forward.3} parent=5 // pred_region
        %s185 = ssub.s32 %s14, 1
        // Predicated region
        $region13: #{_regularized_snake_forward.3} parent=11 // pred_check
          %p186 = pneg %p35
        $region14: #{_regularized_snake_forward.3} parent=11 // pred_check_branch
          %188 = sbr.rel (%p186) target = $region16
        $region15: #{_regularized_snake_forward.3} parent=11 // pred_region
          %s190 = ssub.s32 16, 16
          %191 = vsyncadd [#allocation5], %s190
          %s193 = sshll.u32 %s0, 4
          %s194 = int_to_ptr.vmem [resolvable:$true] %s193
          %196 = dma.vmem_to_smem %s194, 16, [#allocation3], [#allocation5]
        $region16: #{_regularized_snake_forward.3} parent=11 // pred_fallthru
          _
        // Predicated region
        $region17: #{_regularized_snake_forward.3} parent=11 // pred_check
          %p197 = pneg %p56
        $region18: #{_regularized_snake_forward.3} parent=11 // pred_check_branch
          %199 = sbr.rel (%p197) target = $region20
        $region19: #{_regularized_snake_forward.3} parent=11 // pred_region
          _
        $region20: #{_regularized_snake_forward.3} parent=11 // pred_fallthru
          _
        // Predicated region
        $region21: #{_regularized_snake_forward.3} parent=11 // pred_check
          %p200 = pneg %p129
        $region22: #{_regularized_snake_forward.3} parent=11 // pred_check_branch
          %202 = sbr.rel (%p200) target = $region24
        $region23: #{_regularized_snake_forward.3} parent=11 // pred_region
          _
        $region24: #{_regularized_snake_forward.3} parent=11 // pred_fallthru
          _
        // Predicated region
        $region25: #{_regularized_snake_forward.3} parent=11 // pred_check
          %p203 = pneg %p150
        $region26: #{_regularized_snake_forward.3} parent=11 // pred_check_branch
          %205 = sbr.rel (%p203) target = $region28
        $region27: #{_regularized_snake_forward.3} parent=11 // pred_region
          _
        $region28: #{_regularized_snake_forward.3} parent=11 // pred_fallthru
          _
      $region12: #{_regularized_snake_forward.3} parent=5 // pred_fallthru
        _
      %p206 = scmp.lt.s32.totalorder %s14, 2
      // Predicated region
      $region29: #{_regularized_snake_forward.3} parent=5 // pred_check
        %p207 = pneg %p206
      $region30: #{_regularized_snake_forward.3} parent=5 // pred_check_branch
        %209 = sbr.rel (%p207) target = $region32
      $region31: #{_regularized_snake_forward.3} parent=5 // pred_region
        // Predicated region
        $region33: #{_regularized_snake_forward.3} parent=31 // pred_check
          %p210 = pneg %p76
        $region34: #{_regularized_snake_forward.3} parent=31 // pred_check_branch
          %212 = sbr.rel (%p210) target = $region36
        $region35: #{_regularized_snake_forward.3} parent=31 // pred_region
          %s213 = smul.u32 16, %s14
          %p214 = scmp.lt.s32.totalorder %s213, 31
          %s215 = scalar_select %p214, %s213, 31
          %s216 = smul.addr %s215, 2
          %s217 = scalar_lea.vmem %s2, %s216
          %s218 = smul.u32 16, %s14
        $region36: #{_regularized_snake_forward.3} parent=31 // pred_fallthru
          _
        // Predicated region
        $region37: #{_regularized_snake_forward.3} parent=31 // pred_check
          %p219 = pneg %p102
        $region38: #{_regularized_snake_forward.3} parent=31 // pred_check_branch
          %221 = sbr.rel (%p219) target = $region40
        $region39: #{_regularized_snake_forward.3} parent=31 // pred_region
          %s222 = smul.u32 16, %s14
          %p223 = scmp.lt.s32.totalorder %s222, 31
          %s224 = scalar_select %p223, %s222, 31
          %s225 = smul.addr %s224, 2
          %s226 = scalar_lea.vmem %s3, %s225
          %s227 = smul.u32 16, %s14
        $region40: #{_regularized_snake_forward.3} parent=31 // pred_fallthru
          _
      $region32: #{_regularized_snake_forward.3} parent=5 // pred_fallthru
        _
      %p228 = scmp.le.s32.totalorder 1, %s14
      %p229 = scmp.lt.s32.totalorder %s14, 3
      %p230 = pnand %p228, %p229
      %p231 = pneg %p230
      // Predicated region
      $region41: #{_regularized_snake_forward.3} parent=5 // pred_check
        _
      $region42: #{_regularized_snake_forward.3} parent=5 // pred_check_branch
        %233 = sbr.rel (%p230) target = $region44
      $region43: #{_regularized_snake_forward.3} parent=5 // pred_region
        %s234 = ssub.s32 %s14, 1
        // Predicated region
        $region45: #{_regularized_snake_forward.3} parent=43 // pred_check
          %p235 = pneg %p35
        $region46: #{_regularized_snake_forward.3} parent=43 // pred_check_branch
          %237 = sbr.rel (%p235) target = $region48
        $region47: #{_regularized_snake_forward.3} parent=43 // pred_region
          %238 = dma.done [#allocation5], 16
        $region48: #{_regularized_snake_forward.3} parent=43 // pred_fallthru
          _
        %239 = sfence
        %p240 = pneg %p35
        %p241 = pneg %p32
        %p242 = pneg %p56
        %p243 = pneg %p53
        %s244 = smul.u32 16, %s19
        %p245 = scmp.lt.s32.totalorder %s244, 31
        %s246 = scalar_select %p245, %s244, 31
        %s247 = smul.addr %s246, 2
        %s248 = scalar_lea.vmem %s2, %s247
        %p249 = pneg %p82
        %p250 = pneg %p79
        %s251 = smul.u32 16, %s19
        %p252 = scmp.lt.s32.totalorder %s251, 31
        %s253 = scalar_select %p252, %s251, 31
        %s254 = smul.addr %s253, 2
        %s255 = scalar_lea.vmem %s3, %s254
        %p256 = pneg %p108
        %p257 = pneg %p105
        %p258 = pneg %p129
        %p259 = pneg %p126
        %p260 = pneg %p150
        %p261 = pneg %p147
        %p262 = pneg %p171
        %p263 = pneg %p168
        %s264 = smul.u32 16, %s19
        %p265 = scmp.lt.s32.totalorder %s264, 31
        %s266 = scalar_select %p265, %s264, 31
        %s267 = smul.addr %s266, 2
        %s268 = scalar_lea.vmem %s2, %s267
        %s269 = smul.u32 16, %s19
        %s270 = smul.u32 16, %s19
        %p271 = scmp.lt.s32.totalorder %s270, 31
        %s272 = scalar_select %p271, %s270, 31
        %s273 = smul.addr %s272, 2
        %s274 = scalar_lea.vmem %s3, %s273
        %s275 = smul.u32 16, %s19
        %p276 = scmp.eq.s32.totalorder %s19, 0
        // Predicated region
        $region49: #{_regularized_snake_forward.3} parent=43 // pred_check
          %p277 = pneg %p276
        $region50: #{_regularized_snake_forward.3} parent=43 // pred_check_branch
          %279 = sbr.rel (%p277) target = $region52
        $region51: #{_regularized_snake_forward.3} parent=43 // pred_region
          %vm280 = vcmask 0
          %281 = vst.msk [vmem:[#allocation2] sm:$0x1] %vm280, 0.0
        $region52: #{_regularized_snake_forward.3} parent=43 // pred_fallthru
          _
        %v282 = vld [vmem:[%s268] sm:$0xff]
        %v283 = vld [vmem:[%s268 + $0x8] sm:$0xff]
        %v284 = vld [vmem:[%s268 + $0x10] sm:$0xff]
        %v285 = vld [vmem:[%s268 + $0x18] sm:$0xff]
        %v286 = vld [vmem:[%s274] sm:$0xff]
        %v287 = vld [vmem:[%s274 + $0x8] sm:$0xff]
        %v288 = vld [vmem:[%s274 + $0x10] sm:$0xff]
        %v289 = vld [vmem:[%s274 + $0x18] sm:$0xff]
        %v290 = vsub.f32 %v282, %v286
        %v291 = vsub.f32 %v283, %v287
        %v292 = vsub.f32 %v284, %v288
        %v293 = vsub.f32 %v285, %v289
        %v294 = vand.u32 2147483647, %v290
        %v295 = vand.u32 2147483647, %v291
        %v296 = vand.u32 2147483647, %v292
        %v297 = vand.u32 2147483647, %v293
        %v302 = vcombine.high %v294, %v294
        %v304 = vunpack.c.l.s4 1983009808
        %v305 = vunpack.c.0.s8 %v304
        %v306 = vlaneseq
        %v307 = vshrl.u32 %v306, 7
        %v308 = vsub.s32 %v305, %v307
        %v309 = vrot.slane %v294, %v308
        %v311 = vunpack.c.l.s4 1983009808
        %v312 = vunpack.c.0.s8 %v311
        %v313 = vlaneseq
        %v314 = vshrl.u32 %v313, 7
        %v315 = vsub.s32 %v312, %v314
        %v316 = vrot.slane %v302, %v315
        %v317 = vcombine.high %v309, %v309
        %v318 = vcombine.high %v316, %v316
        %v319 = vcombine.high %v295, %v295
        %v321 = vunpack.c.l.s4 1983009808
        %v322 = vunpack.c.0.s8 %v321
        %v323 = vlaneseq
        %v324 = vshrl.u32 %v323, 7
        %v325 = vsub.s32 %v322, %v324
        %v326 = vrot.slane %v295, %v325
        %v328 = vunpack.c.l.s4 1983009808
        %v329 = vunpack.c.0.s8 %v328
        %v330 = vlaneseq
        %v331 = vshrl.u32 %v330, 7
        %v332 = vsub.s32 %v329, %v331
        %v333 = vrot.slane %v319, %v332
        %v334 = vcombine.high %v326, %v326
        %v335 = vcombine.high %v333, %v333
        %v336 = vcombine.high %v296, %v296
        %v338 = vunpack.c.l.s4 1983009808
        %v339 = vunpack.c.0.s8 %v338
        %v340 = vlaneseq
        %v341 = vshrl.u32 %v340, 7
        %v342 = vsub.s32 %v339, %v341
        %v343 = vrot.slane %v296, %v342
        %v345 = vunpack.c.l.s4 1983009808
        %v346 = vunpack.c.0.s8 %v345
        %v347 = vlaneseq
        %v348 = vshrl.u32 %v347, 7
        %v349 = vsub.s32 %v346, %v348
        %v350 = vrot.slane %v336, %v349
        %v351 = vcombine.high %v343, %v343
        %v352 = vcombine.high %v350, %v350
        %v353 = vcombine.high %v297, %v297
        %v355 = vunpack.c.l.s4 1983009808
        %v356 = vunpack.c.0.s8 %v355
        %v357 = vlaneseq
        %v358 = vshrl.u32 %v357, 7
        %v359 = vsub.s32 %v356, %v358
        %v360 = vrot.slane %v297, %v359
        %v362 = vunpack.c.l.s4 1983009808
        %v363 = vunpack.c.0.s8 %v362
        %v364 = vlaneseq
        %v365 = vshrl.u32 %v364, 7
        %v366 = vsub.s32 %v363, %v365
        %v367 = vrot.slane %v353, %v366
        %v368 = vcombine.high %v360, %v360
        %v369 = vcombine.high %v367, %v367
        %vm386 = vcmask 1041408
        %v387 = vsel %vm386, %v309, 0.0
        %v388 = vsel %vm386, %v317, 0.0
        %v389 = vadd.f32 %v387, %v388
        %v390 = vsel %vm386, %v316, 0.0
        %v391 = vadd.f32 %v389, %v390
        %v392 = vsel %vm386, %v318, 0.0
        %v393 = vadd.f32 %v391, %v392
        %v394 = vsel %vm386, %v326, 0.0
        %v395 = vadd.f32 %v393, %v394
        %v396 = vsel %vm386, %v334, 0.0
        %v397 = vadd.f32 %v395, %v396
        %v398 = vsel %vm386, %v333, 0.0
        %v399 = vadd.f32 %v397, %v398
        %v400 = vsel %vm386, %v335, 0.0
        %v401 = vadd.f32 %v399, %v400
        %v402 = vsel %vm386, %v343, 0.0
        %v403 = vadd.f32 %v401, %v402
        %v404 = vsel %vm386, %v351, 0.0
        %v405 = vadd.f32 %v403, %v404
        %v406 = vsel %vm386, %v350, 0.0
        %v407 = vadd.f32 %v405, %v406
        %v408 = vsel %vm386, %v352, 0.0
        %v409 = vadd.f32 %v407, %v408
        %v410 = vsel %vm386, %v360, 0.0
        %v411 = vadd.f32 %v409, %v410
        %v412 = vsel %vm386, %v368, 0.0
        %v413 = vadd.f32 %v411, %v412
        %v414 = vsel %vm386, %v367, 0.0
        %v415 = vadd.f32 %v413, %v414
        %v416 = vsel %vm386, %v369, 0.0
        %v417 = vadd.f32 %v415, %v416
        %418 = vadd.xlane.f32.xlu0 %v417
        %v419 = vpop.xlane.xlu0 %418
        %v420 = vld [vmem:[#allocation2] sm:$0x1]
        %v421 = vld [vmem:[%s1] sm:$0x3]
        %v422 = vmul.f32 %v421, %v419
        %vm423 = vcmask 1024
        %v424 = vsel %vm423, %v422, 0.0
        %425 = vadd.xlane.f32.xlu0 %v424
        %v426 = vpop.xlane.xlu0 %425
        %v427 = vrot.slane %v426, 4
        %v428 = vadd.f32 %v426, %v427
        %v429 = vrot.slane %v428, 2
        %v430 = vadd.f32 %v428, %v429
        %v431 = vrot.slane %v430, 1
        %v432 = vadd.f32 %v430, %v431
        %s433 = vtos %v432
        %v434 = vstv %s433
        %v435 = vadd.f32 %v420, %v434
        %vm436 = vcmask 0
        %437 = vst.msk [vmem:[#allocation2] sm:$0x1] %vm436, %v435
        %p438 = scmp.eq.s32.totalorder %s19, 1
        // Predicated region
        $region53: #{_regularized_snake_forward.3} parent=43 // pred_check
          %p439 = pneg %p438
        $region54: #{_regularized_snake_forward.3} parent=43 // pred_check_branch
          %441 = sbr.rel (%p439) target = $region56
        $region55: #{_regularized_snake_forward.3} parent=43 // pred_region
          %v442 = vld [vmem:[#allocation2] sm:$0x1]
          %v443 = vmul.f32 %v442, 0.00015625
          %v444 = vld [vmem:[%s4] sm:$0xff]
          %v445 = vld [vmem:[%s4 + $0x8] sm:$0xff]
          %v446 = vld [vmem:[%s5] sm:$0xff]
          %v447 = vld [vmem:[%s5 + $0x8] sm:$0xff]
          %v448 = vsub.f32 %v444, %v446
          %v449 = vsub.f32 %v445, %v447
          %v450 = vmul.f32 %v448, %v448
          %v451 = vmul.f32 %v449, %v449
          %454 = vrot.lane.b32.xlu0 %v450, 127
          %v455 = vpop.permute.xlu0 %454
          %456 = vrot.lane.b32.xlu0 %v451, 127
          %v457 = vpop.permute.xlu0 %456
          %v460 = vadd.f32 %v450, %v455
          %v461 = vadd.f32 %v451, %v457
          %462 = vrot.lane.b32.xlu0 %v450, 126
          %v463 = vpop.permute.xlu0 %462
          %464 = vrot.lane.b32.xlu0 %v451, 126
          %v465 = vpop.permute.xlu0 %464
          %v468 = vadd.f32 %v460, %v463
          %v469 = vadd.f32 %v461, %v465
          %v470 = vrsqrt.pop %v468
          %v471 = vmul.f32 %v468, %v470
          %vm472 = vcmp.eq.f32.partialorder %v468, inf
          %v473 = vsel %vm472, %v468, %v471
          %vm474 = vcmp.eq.f32.partialorder %v468, 0.0
          %v475 = vand.u32 %v468, 2147483648
          %v476 = vsel %vm474, %v475, %v473
          %v477 = vrsqrt.pop %v469
          %v478 = vmul.f32 %v469, %v477
          %vm479 = vcmp.eq.f32.partialorder %v469, inf
          %v480 = vsel %vm479, %v469, %v478
          %vm481 = vcmp.eq.f32.partialorder %v469, 0.0
          %v482 = vand.u32 %v469, 2147483648
          %v483 = vsel %vm481, %v482, %v480
          %vm484 = vcmask 7168
          %v485 = vsel %vm484, %v476, 0.0
          %v486 = vsel %vm484, %v483, 0.0
          %v487 = vadd.f32 %v485, %v486
          %488 = vadd.xlane.f32.xlu0 %v487
          %v489 = vpop.xlane.xlu0 %488
          %v490 = vrot.slane %v489, 4
          %v491 = vadd.f32 %v489, %v490
          %v492 = vrot.slane %v491, 2
          %v493 = vadd.f32 %v491, %v492
          %v494 = vrot.slane %v493, 1
          %v495 = vadd.f32 %v493, %v494
          %s496 = vtos %v495
          %v497 = vstv %s496
          %v498 = vmul.f32 %v497, 0.0625
          %s499 = sld [smem:[#allocation3]]
          %v500 = vstv %s499
          %v501 = vmul.f32 %v500, %v443
          %s502 = sld [smem:[#allocation3 + $0x1]]
          %v503 = vstv %s502
          %v504 = vmul.f32 %v503, %v498
          %v505 = vadd.f32 %v501, %v504
          %506 = vst.msk [vmem:[#allocation6] sm:$0x1] %vm436, %v505
        $region56: #{_regularized_snake_forward.3} parent=43 // pred_fallthru
          _
        // Predicated region
        $region57: #{_regularized_snake_forward.3} parent=43 // pred_check
          %p507 = pneg %p168
        $region58: #{_regularized_snake_forward.3} parent=43 // pred_check_branch
          %509 = sbr.rel (%p507) target = $region60
        $region59: #{_regularized_snake_forward.3} parent=43 // pred_region
          %s511 = ssub.s32 16, 16
          %512 = vsyncadd [#allocation4], %s511
          %s514 = sshll.u32 [#allocation6], 4
          %s515 = int_to_ptr.vmem [resolvable:$true] %s514
          %517 = dma.vmem_to_hbm [thread:$0]  %s515, 16, %s6, [#allocation4]
        $region60: #{_regularized_snake_forward.3} parent=43 // pred_fallthru
          _
        // Predicated region
        $region61: #{_regularized_snake_forward.3} parent=43 // pred_check
          %p518 = pneg %p168
        $region62: #{_regularized_snake_forward.3} parent=43 // pred_check_branch
          %520 = sbr.rel (%p518) target = $region64
        $region63: #{_regularized_snake_forward.3} parent=43 // pred_region
          %521 = dma.done [#allocation4], 16
        $region64: #{_regularized_snake_forward.3} parent=43 // pred_fallthru
          _
      $region44: #{_regularized_snake_forward.3} parent=5 // pred_fallthru
        _
      %p522 = scmp.le.s32.totalorder 2, %s14
      // Predicated region
      $region65: #{_regularized_snake_forward.3} parent=5 // pred_check
        %p523 = pneg %p522
      $region66: #{_regularized_snake_forward.3} parent=5 // pred_check_branch
        %525 = sbr.rel (%p523) target = $region68
      $region67: #{_regularized_snake_forward.3} parent=5 // pred_region
        %s526 = ssub.s32 %s14, 2
      $region68: #{_regularized_snake_forward.3} parent=5 // pred_fallthru
        _
    $region6: #{_regularized_snake_forward.3} parent=1 // loop_footer
      %s18 = sadd.s32 1, %s14
    $region7: #{_regularized_snake_forward.3} parent=1 // loop_footer_branch
      %13 = sbr.rel target = $region3
    $region8: #{_regularized_snake_forward.3} parent=1 // loop_exit
      _
    %527 = vsyncpa [#allocation4], 1
    %s528 = scalar_lea.sflag [#allocation4], 1
    %529 = vsyncpa %s528, 1
    %530 = vsyncpa [#allocation5], 1
    %s531 = scalar_lea.sflag [#allocation5], 1
    %532 = vsyncpa %s531, 1

</llo_original>
